<compile_context>
chip_gen: v6e
topology: v6e:2x2x1
jax: 0.10.0
libtpu: 0.0.40
codegen_flags: <defaults>
</compile_context>

<pallas_src>
import functools
import math

import jax
import jax.numpy as jnp
from jax.experimental import pallas as pl
from jax.experimental.pallas import tpu as pltpu

_LANE = 128

# Single-buffer constant operands; flipped off by the fallback in __main__ if
# this jax/libtpu build rejects pl.Buffered(1).
_SINGLE_BUFFER = [True]


# ---------------------------------------------------------------------------
# Helpers: budgets, tiles, specs
# ---------------------------------------------------------------------------
def _round_up(x, m):
    return (x + m - 1) // m * m


def _vmem_budgets():
    """(vmem_limit_bytes, per-block byte budget), generation aware.

    v7x has 64 MiB physical VMEM per TensorCore; v5e/v6e have 128 MiB.
    """
    phys = 64 * 2**20  # conservative default if the query is unavailable
    try:
        phys = int(pltpu.get_tpu_info().vmem_capacity_bytes)
    except Exception:
        pass
    if phys >= 96 * 2**20:            # v5e / v6e (128 MiB physical VMEM)
        return 64 * 2**20, 8 * 2**20
    return 28 * 2**20, 3 * 2**20      # v7x-class (64 MiB physical VMEM)


def _const_spec(block_shape, index_map):
    """BlockSpec for an operand whose block index never changes: single-buffer
    it (it is only DMA'd once, so double-buffering just wastes VMEM)."""
    if _SINGLE_BUFFER[0]:
        try:
            return pl.BlockSpec(block_shape, index_map,
                                pipeline_mode=pl.Buffered(1))
        except Exception:
            pass
    return pl.BlockSpec(block_shape, index_map)


def _cparams(dimension_semantics, vmem_limit):
    return pltpu.CompilerParams(dimension_semantics=dimension_semantics,
                                vmem_limit_bytes=vmem_limit)


def _pick_spatial_tile(s, rows, block_budget):
    """Lane tile for the channel-mix kernels: full width if it fits the budget,
    else the largest multiple of 128 that does.  The ragged last block (when ts
    does not divide s) is handled by Pallas masking, so no HBM pad/slice."""
    max_t = max(_LANE, (block_budget // (4 * max(rows, 1))) // _LANE * _LANE)
    return s if s <= max_t else max_t


def _largest_divisor_leq(n, cap):
    cap = max(1, min(n, cap))
    for d in range(cap, 0, -1):
        if n % d == 0:
            return d
    return 1


# ---------------------------------------------------------------------------
# Pallas kernels
# ---------------------------------------------------------------------------
def _mix_kernel(x_ref, w_ref, b_ref, o_ref):
    # (Cout, Cin) @ (Cin, TS) + (Cout, 1): weight-stationary channel mix over a
    # lane-dense spatial slab; f32 accumulation.
    acc = jnp.dot(w_ref[...], x_ref[0], preferred_element_type=jnp.float32)
    o_ref[0] = (acc + b_ref[...]).astype(o_ref.dtype)


def _mix2_kernel(a_ref, b_ref, wa_ref, wb_ref, bias_ref, o_ref):
    # Split-K fused concat+conv: Wa @ a + Wb @ b + bias (concat never hits HBM).
    acc = jnp.dot(wa_ref[...], a_ref[0], preferred_element_type=jnp.float32)
    acc = acc + jnp.dot(wb_ref[...], b_ref[0], preferred_element_type=jnp.float32)
    o_ref[0] = (acc + bias_ref[...]).astype(o_ref.dtype)


def _trilinear_kernel(t_ref, ad_ref, bhw_ref, o_ref, *, cblk, din):
    # t_ref:   (1, C_blk*Din, Hin*Win)  one channel-block of one batch element
    # ad_ref:  (Dout, Din)              D interp matrix
    # bhw_ref: (Hin*Win, hw_tile)       Kronecker H+W interp (lane-dense tile)
    # o_ref:   (1, C_blk, Dout, hw_tile)
    # HW interp first (one big-M matmul, M = C_blk*Din), then the cheap D
    # interp as a short unrolled per-channel loop; nothing touches HBM between.
    thw = jnp.dot(t_ref[0], bhw_ref[...], preferred_element_type=jnp.float32)
    ad = ad_ref[...]
    for ci in range(cblk):
        o_ref[0, ci] = jnp.dot(
            ad, thw[ci * din:(ci + 1) * din, :],
            preferred_element_type=jnp.float32).astype(o_ref.dtype)


# ---------------------------------------------------------------------------
# 1x1x1 Conv3d == weight-stationary channel matmul over the spatial lane axis
# ---------------------------------------------------------------------------
def conv1x1x1(x, weight, bias):
    """x: (N, Cin, D, H, W); weight: (Cout, Cin, 1, 1, 1); bias: (Cout,)."""
    n, cin, d, h, w = x.shape
    cout = weight.shape[0]
    s = d * h * w
    vmem_limit, block_budget = _vmem_budgets()
    ts = _pick_spatial_tile(s, cin + cout, block_budget)

    xr = x.reshape(n, cin, s)                        # free view, NCDHW kept
    wm = weight.reshape(cout, cin).astype(x.dtype)   # activation dtype (bf16 MXU)
    b2 = bias.reshape(cout, 1).astype(jnp.float32)   # added to the f32 accumulator

    y = pl.pallas_call(
        _mix_kernel,
        out_shape=jax.ShapeDtypeStruct((n, cout, s), x.dtype),
        grid=(n, pl.cdiv(s, ts)),
        in_specs=[
            pl.BlockSpec((1, cin, ts), lambda i, j: (i, 0, j)),
            _const_spec((cout, cin), lambda i, j: (0, 0)),
            _const_spec((cout, 1), lambda i, j: (0, 0)),
        ],
        out_specs=pl.BlockSpec((1, cout, ts), lambda i, j: (i, 0, j)),
        compiler_params=_cparams(("parallel", "parallel"), vmem_limit),
    )(xr, wm, b2)
    return y.reshape(n, cout, d, h, w)


def concat_conv1x1x1(a, b, weight, bias):
    """conv1x1x1(concat([a, b], C), weight, bias) as a fused split-K matmul."""
    n, ca, d, h, w = a.shape
    cb = b.shape[1]
    cout = weight.shape[0]
    assert weight.shape[1] == ca + cb
    s = d * h * w
    vmem_limit, block_budget = _vmem_budgets()
    ts = _pick_spatial_tile(s, ca + cb + cout, block_budget)

    ar = a.reshape(n, ca, s)
    br = b.reshape(n, cb, s)
    wm = weight.reshape(cout, ca + cb).astype(a.dtype)
    wa, wb = wm[:, :ca], wm[:, ca:]
    b2 = bias.reshape(cout, 1).astype(jnp.float32)

    y = pl.pallas_call(
        _mix2_kernel,
        out_shape=jax.ShapeDtypeStruct((n, cout, s), a.dtype),
        grid=(n, pl.cdiv(s, ts)),
        in_specs=[
            pl.BlockSpec((1, ca, ts), lambda i, j: (i, 0, j)),
            pl.BlockSpec((1, cb, ts), lambda i, j: (i, 0, j)),
            _const_spec((cout, ca), lambda i, j: (0, 0)),
            _const_spec((cout, cb), lambda i, j: (0, 0)),
            _const_spec((cout, 1), lambda i, j: (0, 0)),
        ],
        out_specs=pl.BlockSpec((1, cout, ts), lambda i, j: (i, 0, j)),
        compiler_params=_cparams(("parallel", "parallel"), vmem_limit),
    )(ar, br, wa, wb, b2)
    return y.reshape(n, cout, d, h, w)


# ---------------------------------------------------------------------------
# Trilinear interpolation (align_corners=True), fused per (batch, channel-block)
# ---------------------------------------------------------------------------
def interp_matrix(out_size, in_size):
    """(out_size, in_size) linear-interp matrix, PyTorch align_corners=True."""
    if out_size == 1:
        src = jnp.zeros((1,), jnp.float32)
    else:
        src = jnp.arange(out_size, dtype=jnp.float32) * (in_size - 1) / (out_size - 1)
    i0 = jnp.clip(jnp.floor(src).astype(jnp.int32), 0, in_size - 1)
    i1 = jnp.minimum(i0 + 1, in_size - 1)
    frac = src - i0.astype(jnp.float32)
    return (jax.nn.one_hot(i0, in_size, dtype=jnp.float32) * (1.0 - frac)[:, None]
            + jax.nn.one_hot(i1, in_size, dtype=jnp.float32) * frac[:, None])


def trilinear_resize(x, target_dhw):
    """x: (N, C, Din, Hin, Win) -> (N, C, Dout, Hout, Wout), align_corners=True."""
    n, c, din, hin, win = x.shape
    dout, hout, wout = (int(t) for t in target_dhw)
    if (dout, hout, wout) == (din, hin, win):
        return x

    dtype = x.dtype
    itemsize = jnp.dtype(dtype).itemsize
    hw_in, hw_out = hin * win, hout * wout
    vmem_limit, block_budget = _vmem_budgets()

    # Lane tile over the output HW axis: multiple of 128, sized so the B_hw
    # block stays within the per-generation VMEM budget (fits v7x at any size).
    hw_out_128 = _round_up(hw_out, _LANE)
    max_hw_tile = max(_LANE,
                      (block_budget // max(hw_in * itemsize, 1)) // _LANE * _LANE)
    hw_tile = min(hw_out_128, max_hw_tile)
    hw_out_p = _round_up(hw_out, hw_tile)     # padded -> every store lane-dense
    n_hw_tiles = hw_out_p // hw_tile

    # Channel block: as many channels as the budget allows, so the dominant HW
    # matmul has M = C_blk*Din and grid steps shrink by C_blk.
    per_chan = din * hw_in * itemsize + (din + dout) * hw_tile * 4
    cblk = _largest_divisor_leq(c, block_budget // max(per_chan, 1))
    c_blocks = c // cblk
    nc = n * c_blocks

    a_d = interp_matrix(dout, din)            # (Dout, Din); f32 (tiny, multiplies f32 acc)
    b_hw = jnp.kron(interp_matrix(hout, hin), interp_matrix(wout, win)).T
    if hw_out_p != hw_out:
        b_hw = jnp.pad(b_hw, ((0, 0), (0, hw_out_p - hw_out)))
    b_hw = b_hw.astype(dtype)                 # native MXU path for bf16 activations

    t_in = x.reshape(nc, cblk * din, hw_in)   # free contiguous regrouping

    # b_hw is per-hw-tile; single-buffer it only when its block index is constant.
    b_spec_ctor = _const_spec if n_hw_tiles == 1 else pl.BlockSpec

    y = pl.pallas_call(
        functools.partial(_trilinear_kernel, cblk=cblk, din=din),
        out_shape=jax.ShapeDtypeStruct((nc, cblk, dout, hw_out_p), dtype),
        grid=(nc, n_hw_tiles),
        in_specs=[
            pl.BlockSpec((1, cblk * din, hw_in), lambda g, t: (g, 0, 0)),
            _const_spec((dout, din), lambda g, t: (0, 0)),
            b_spec_ctor((hw_in, hw_tile), lambda g, t: (0, t)),
        ],
        out_specs=pl.BlockSpec((1, cblk, dout, hw_tile),
                               lambda g, t: (g, 0, 0, t)),
        compiler_params=_cparams(("parallel", "arbitrary"), vmem_limit),
    )(t_in, a_d, b_hw)

    y = y.reshape(n, c, dout, hw_out_p)
    if hw_out_p != hw_out:
        y = y[..., :hw_out]                   # no-op for 128-multiple HW sizes
    return y.reshape(n, c, dout, hout, wout)


# ---------------------------------------------------------------------------
# LinearUpSampling forward
# ---------------------------------------------------------------------------
def linear_upsampling_forward(params, x, skip_x=None, scale_factor=2):
    out = conv1x1x1(x, params["w1"], params["b1"])
    if skip_x is not None:
        out = trilinear_resize(out, skip_x.shape[2:])
        out = concat_conv1x1x1(out, skip_x, params["w2"], params["b2"])
    else:
        target = tuple(int(s * scale_factor) for s in out.shape[2:])
        out = trilinear_resize(out, target)
    return out


# ---------------------------------------------------------------------------
# Deterministic parameter init (matches nn.Conv3d shapes)
# ---------------------------------------------------------------------------
def init_params(key, in_channels, out_channels):
    k1, k2, k3, k4 = jax.random.split(key, 4)
    bound1 = 1.0 / math.sqrt(in_channels)
    return {
        "w1": jax.random.uniform(k1, (out_channels, in_channels, 1, 1, 1),
                                 jnp.float32, -bound1, bound1),
        "b1": jax.random.uniform(k2, (out_channels,), jnp.float32, -bound1, bound1),
        "w2": jax.random.uniform(k3, (out_channels, in_channels, 1, 1, 1),
                                 jnp.float32, -bound1, bound1),
        "b2": jax.random.uniform(k4, (out_channels,), jnp.float32, -bound1, bound1),
    }


# ---------------------------------------------------------------------------
# Pure-jnp reference (same math, separable interp, no Pallas) for sanity check
# ---------------------------------------------------------------------------
def _ref_forward(params, x, skip_x=None, scale_factor=2):
    def conv(x, w, b):
        return jnp.einsum("ncdhw,oc->nodhw", x, w.reshape(w.shape[0], w.shape[1])) \
               + b[None, :, None, None, None]

    def resize(x, target):
        for ax, ts in zip((2, 3, 4), target):
            A = interp_matrix(int(ts), x.shape[ax])
            x = jnp.moveaxis(jnp.moveaxis(x, ax, -1) @ A.T, -1, ax)
        return x

    out = conv(x, params["w1"], params["b1"])
    if skip_x is not None:
        out = resize(out, skip_x.shape[2:])
        out = jnp.concatenate([out, skip_x], axis=1)
        out = conv(out, params["w2"], params["b2"])
    else:
        out = resize(out, tuple(int(s * scale_factor) for s in out.shape[2:]))
    return out


def _run_demo():
    key = jax.random.PRNGKey(0)
    kx, kskip, kp = jax.random.split(key, 3)

    in_channels, out_channels = 8, 4
    # x is the low-res decoder feature, skip_x the encoder feature to merge.
    x = jax.random.normal(kx, (2, in_channels, 4, 4, 4), jnp.float32)
    skip_x = jax.random.normal(kskip, (2, out_channels, 8, 8, 8), jnp.float32)

    params = init_params(kp, in_channels, out_channels)

    # Path with skip connection (conv1 -> trilinear to skip size -> split-K conv2)
    out_skip = jax.block_until_ready(linear_upsampling_forward(params, x, skip_x))
    assert out_skip.shape == (2, out_channels, 8, 8, 8)

    # Path without skip (conv1 -> trilinear x2)
    out_plain = jax.block_until_ready(
        linear_upsampling_forward(params, x, None, scale_factor=2))
    assert out_plain.shape == (2, out_channels, 8, 8, 8)

    # Sanity check against the pure-jnp reference.
    ref_skip = _ref_forward(params, x, skip_x)
    ref_plain = _ref_forward(params, x, None, scale_factor=2)
    assert jnp.allclose(out_skip, ref_skip, atol=3e-5, rtol=3e-5)
    assert jnp.allclose(out_plain, ref_plain, atol=3e-5, rtol=3e-5)


if __name__ == "__main__":
    try:
        _run_demo()
    except Exception:
        # If this jax/libtpu build rejects pl.Buffered(1) single-buffering of
        # constant operands, fall back to default double-buffering and retry.
        if _SINGLE_BUFFER[0]:
            _SINGLE_BUFFER[0] = False
            _run_demo()
        else:
            raise
    print("KERNEL_OK")
</pallas_src>

<mosaic_0001>
module attributes {stable_mosaic.version = 11 : i64} {
  func.func @_mix_kernel(%arg0: i32, %arg1: i32, %arg2: memref<1x8x64xf32, #tpu.memory_space<vmem>>, %arg3: memref<4x8xf32, #tpu.memory_space<vmem>>, %arg4: memref<4x1xf32, #tpu.memory_space<vmem>>, %arg5: memref<1x4x64xf32, #tpu.memory_space<vmem>>) attributes {dimension_semantics = [#tpu.dimension_semantics<parallel>, #tpu.dimension_semantics<parallel>], iteration_bounds = array<i64: 2, 1>, scalar_prefetch = 0 : i64, scratch_operands = 0 : i64, tpu.core_type = #tpu.core_type<tc>, window_params = [{transform_indices = @transform_0, window_bounds = array<i64: 1, 8, 64>}, {pipeline_mode = #tpu.pipeline_mode<synchronous>, transform_indices = @transform_1, window_bounds = array<i64: 4, 8>}, {pipeline_mode = #tpu.pipeline_mode<synchronous>, transform_indices = @transform_2, window_bounds = array<i64: 4, 1>}, {transform_indices = @transform_3, window_bounds = array<i64: 1, 4, 64>}]} {
    %c0 = arith.constant 0 : index
    %c0_0 = arith.constant 0 : index
    %0 = vector.load %arg3[%c0, %c0_0] : memref<4x8xf32, #tpu.memory_space<vmem>>, vector<4x8xf32>
    %c0_1 = arith.constant 0 : index
    %c0_2 = arith.constant 0 : index
    %c0_3 = arith.constant 0 : index
    %1 = vector.load %arg2[%c0_1, %c0_2, %c0_3] : memref<1x8x64xf32, #tpu.memory_space<vmem>>, vector<1x8x64xf32>
    %2 = vector.shape_cast %1 : vector<1x8x64xf32> to vector<8x64xf32>
    %cst = arith.constant dense<0.000000e+00> : vector<4x64xf32>
    %3 = tpu.matmul %0, %2, %cst {dimension_numbers = #tpu.dot_dimension_numbers<[1], [0], [0], [1], [0, 0, 1, 1], [], []>} : vector<4x8xf32>, vector<8x64xf32>, vector<4x64xf32> -> vector<4x64xf32>
    %c0_4 = arith.constant 0 : index
    %c0_5 = arith.constant 0 : index
    %4 = vector.load %arg4[%c0_4, %c0_5] : memref<4x1xf32, #tpu.memory_space<vmem>>, vector<4x1xf32>
    %5 = vector.broadcast %4 : vector<4x1xf32> to vector<4x64xf32>
    %6 = arith.addf %3, %5 : vector<4x64xf32>
    %c0_6 = arith.constant 0 : index
    %c0_7 = arith.constant 0 : index
    %c0_8 = arith.constant 0 : index
    %7 = vector.load %arg5[%c0_6, %c0_7, %c0_8] : memref<1x4x64xf32, #tpu.memory_space<vmem>>, vector<1x4x64xf32>
    %8 = vector.shape_cast %7 : vector<1x4x64xf32> to vector<4x64xf32>
    %9 = vector.shape_cast %6 : vector<4x64xf32> to vector<1x4x64xf32>
    tpu.vector_store %arg5[%c0_6, %c0_7, %c0_8], %9 {strides = array<i32>} : memref<1x4x64xf32, #tpu.memory_space<vmem>>, vector<1x4x64xf32>,
    return
  }
  func.func @transform_0(%arg0: i32, %arg1: i32) -> (i32, i32, i32) {
    %c0_i32 = arith.constant 0 : i32
    %c0_i32_0 = arith.constant 0 : i32
    return %arg0, %c0_i32, %arg1 : i32, i32, i32
  }
  func.func @transform_1(%arg0: i32, %arg1: i32) -> (i32, i32) {
    %c0_i32 = arith.constant 0 : i32
    %c0_i32_0 = arith.constant 0 : i32
    %c0_i32_1 = arith.constant 0 : i32
    return %c0_i32, %c0_i32_0 : i32, i32
  }
  func.func @transform_2(%arg0: i32, %arg1: i32) -> (i32, i32) {
    %c0_i32 = arith.constant 0 : i32
    %c0_i32_0 = arith.constant 0 : i32
    %c0_i32_1 = arith.constant 0 : i32
    return %c0_i32, %c0_i32_0 : i32, i32
  }
  func.func @transform_3(%arg0: i32, %arg1: i32) -> (i32, i32, i32) {
    %c0_i32 = arith.constant 0 : i32
    %c0_i32_0 = arith.constant 0 : i32
    return %arg0, %c0_i32, %arg1 : i32, i32, i32
  }
}

module attributes {stable_mosaic.version = 11 : i64} {
  func.func @_mix_kernel(%arg0: i32, %arg1: i32, %arg2: memref<1x8x64xf32, #tpu.memory_space<vmem>>, %arg3: memref<4x8xf32, #tpu.memory_space<vmem>>, %arg4: memref<4x1xf32, #tpu.memory_space<vmem>>, %arg5: memref<1x4x64xf32, #tpu.memory_space<vmem>>) attributes {dimension_semantics = [#tpu.dimension_semantics<parallel>, #tpu.dimension_semantics<parallel>], iteration_bounds = array<i64: 2, 1>, scalar_prefetch = 0 : i64, scratch_operands = 0 : i64, tpu.core_type = #tpu.core_type<tc>, window_params = [{transform_indices = @transform_0, window_bounds = array<i64: 1, 8, 64>}, {pipeline_mode = #tpu.pipeline_mode<synchronous>, transform_indices = @transform_1, window_bounds = array<i64: 4, 8>}, {pipeline_mode = #tpu.pipeline_mode<synchronous>, transform_indices = @transform_2, window_bounds = array<i64: 4, 1>}, {transform_indices = @transform_3, window_bounds = array<i64: 1, 4, 64>}]} {
    %c0 = arith.constant 0 : index
    %c0_0 = arith.constant 0 : index
    %0 = vector.load %arg3[%c0, %c0_0] : memref<4x8xf32, #tpu.memory_space<vmem>>, vector<4x8xf32>
    %c0_1 = arith.constant 0 : index
    %c0_2 = arith.constant 0 : index
    %c0_3 = arith.constant 0 : index
    %1 = vector.load %arg2[%c0_1, %c0_2, %c0_3] : memref<1x8x64xf32, #tpu.memory_space<vmem>>, vector<1x8x64xf32>
    %2 = vector.shape_cast %1 : vector<1x8x64xf32> to vector<8x64xf32>
    %cst = arith.constant dense<0.000000e+00> : vector<4x64xf32>
    %3 = tpu.matmul %0, %2, %cst {dimension_numbers = #tpu.dot_dimension_numbers<[1], [0], [0], [1], [0, 0, 1, 1], [], []>} : vector<4x8xf32>, vector<8x64xf32>, vector<4x64xf32> -> vector<4x64xf32>
    %c0_4 = arith.constant 0 : index
    %c0_5 = arith.constant 0 : index
    %4 = vector.load %arg4[%c0_4, %c0_5] : memref<4x1xf32, #tpu.memory_space<vmem>>, vector<4x1xf32>
    %5 = vector.broadcast %4 : vector<4x1xf32> to vector<4x64xf32>
    %6 = arith.addf %3, %5 : vector<4x64xf32>
    %c0_6 = arith.constant 0 : index
    %c0_7 = arith.constant 0 : index
    %c0_8 = arith.constant 0 : index
    %7 = vector.load %arg5[%c0_6, %c0_7, %c0_8] : memref<1x4x64xf32, #tpu.memory_space<vmem>>, vector<1x4x64xf32>
    %8 = vector.shape_cast %7 : vector<1x4x64xf32> to vector<4x64xf32>
    %9 = vector.shape_cast %6 : vector<4x64xf32> to vector<1x4x64xf32>
    tpu.vector_store %arg5[%c0_6, %c0_7, %c0_8], %9 {strides = array<i32>} : memref<1x4x64xf32, #tpu.memory_space<vmem>>, vector<1x4x64xf32>,
    return
  }
  func.func @transform_0(%arg0: i32, %arg1: i32) -> (i32, i32, i32) {
    %c0_i32 = arith.constant 0 : i32
    %c0_i32_0 = arith.constant 0 : i32
    return %arg0, %c0_i32, %arg1 : i32, i32, i32
  }
  func.func @transform_1(%arg0: i32, %arg1: i32) -> (i32, i32) {
    %c0_i32 = arith.constant 0 : i32
    %c0_i32_0 = arith.constant 0 : i32
    %c0_i32_1 = arith.constant 0 : i32
    return %c0_i32, %c0_i32_0 : i32, i32
  }
  func.func @transform_2(%arg0: i32, %arg1: i32) -> (i32, i32) {
    %c0_i32 = arith.constant 0 : i32
    %c0_i32_0 = arith.constant 0 : i32
    %c0_i32_1 = arith.constant 0 : i32
    return %c0_i32, %c0_i32_0 : i32, i32
  }
  func.func @transform_3(%arg0: i32, %arg1: i32) -> (i32, i32, i32) {
    %c0_i32 = arith.constant 0 : i32
    %c0_i32_0 = arith.constant 0 : i32
    return %arg0, %c0_i32, %arg1 : i32, i32, i32
  }
}

</mosaic_0001>

<llo_original>
// kernel: tpu_custom_call.1
$region0: #{tpu_custom_call.1}
  #allocation0 [shape = 'u32[]', space=smem, size = 0x4, offset = 0x4, fixed_abs, tag = 'smem constant byte address 0x4 - core index']
  #allocation1 [shape = 'u32[144,128]{1,0:T(1,128)}', space=vmem, size = 0x12000, scoped, tag = 'internal scratch']
  %s0 = inlined_call_operand.hbm [shape: f32[2,8,64], index: 0, kind: input, shape index: {}]
  %s1 = inlined_call_operand.vmem [shape: f32[4,8], index: 1, kind: input, shape index: {}]
  %s2 = inlined_call_operand.vmem [shape: f32[4,1], index: 2, kind: input, shape index: {}]
  %s3 = inlined_call_operand.hbm [shape: f32[2,4,64], index: 3, kind: output, shape index: {}]
  %s4 = sld [smem:[#allocation0]]
  $region49: #{tpu_custom_call.1} parent=0
    _
  %s6 = ssub.s32 1, %s4
  %s7 = scalar_select 0, %s6, %s4
  $region1: #{tpu_custom_call.1} parent=0
    #allocation2 [shape = 'u8[8192]{0}', space=vmem, size = 0x2000, scoped, tag = 'input window, operand 0']
    #allocation3 [shape = 's32[2]{0}', space=sflag, size = 0x8, scoped, tag = 'scoped memory for tpu_custom_call.1']
    #allocation4 [shape = 's32[2]{0}', space=sflag, size = 0x8, scoped, tag = 'scoped memory for tpu_custom_call.1']
    #allocation5 [shape = 'u8[4096]{0}', space=vmem, size = 0x1000, scoped, tag = 'output window, operand 0']
    %8 = vsyncpa [#allocation3], 0
    %s9 = scalar_lea.sflag [#allocation3], 1
    %10 = vsyncpa %s9, 0
    %11 = vsyncpa [#allocation4], 0
    %s12 = scalar_lea.sflag [#allocation4], 1
    %13 = vsyncpa %s12, 0
    loop: start=0, step=1, limit=4
    $region2: #{tpu_custom_call.1} parent=1 // loop_pre_header
      _
    $region3: #{tpu_custom_call.1} parent=1 // loop_header
      %s15 = sphi 0, %s19
      %p16 = scmp.ge.s32.totalorder %s15, 4
      %s22 = sphi 0, %s34
      %s23 = sphi 0, %s30
      %s24 = sphi 0, %s22
      %s25 = sphi 0, %s23
      %s26 = sphi 0, %s24
      %s27 = sphi 0, %s25
      %s39 = sphi 0, %s41
      %s42 = sphi 0, %s39
      %s43 = sphi 0, %s42
      %s59 = sphi 0, %s43
      %s63 = sphi 0, %s63
      %s65 = sphi 0, %s63
      %s66 = sphi 0, %s65
      %s80 = sphi 0, %s66
      %s84 = sphi 0, %s84
      %s86 = sphi 0, %s84
      %s87 = sphi 0, %s86
      %s101 = sphi 0, %s87
      %s109 = sphi 0, %s111
      %s112 = sphi 0, %s109
      %s113 = sphi 0, %s112
      %s129 = sphi 0, %s113
    $region4: #{tpu_custom_call.1} parent=1 // loop_header_branch
      %18 = sbr.rel (%p16) target = $region8
    $region5: #{tpu_custom_call.1} parent=1 // loop_body
      %s20 = ssub.s32 %s15, 1
      %s21 = ssub.s32 %s15, 2
      %s28 = sadd.s32 1, %s23
      %p29 = scmp.ge.s32.totalorder %s28, 1
      %s30 = scalar_select %p29, 0, %s28
      %s31 = sadd.s32 1, %s22
      %s32 = scalar_select %p29, %s31, %s22
      %p33 = scmp.ge.s32.totalorder %s32, 2
      %s34 = scalar_select %p33, 0, %s32
      %s35 = ssub.s32 %s22, %s34
      %s36 = ssub.s32 %s23, %s30
      %s37 = sor.u32 %s35, %s36
      %p38 = scmp.eq.s32.totalorder %s37, 0
      %s40 = sadd.s32 %s39, 1
      %s41 = scalar_select %p38, %s39, %s40
      %p44 = pneg %p38
      %p45 = scmp.eq.s32.totalorder %s15, 1
      %p46 = por %p44, %p45
      %p47 = scmp.ne.s32.totalorder %s39, %s42
      %p48 = scmp.eq.s32.totalorder %s15, 0
      %p49 = por %p47, %p48
      %p50 = scmp.ne.s32.totalorder %s39, %s42
      %p51 = scmp.eq.s32.totalorder %s20, 1
      %p52 = por %p50, %p51
      %p53 = scmp.ne.s32.totalorder %s42, %s43
      %p54 = scmp.eq.s32.totalorder %s20, 0
      %p55 = por %p53, %p54
      %p56 = scmp.ne.s32.totalorder %s42, %s43
      %p57 = scmp.eq.s32.totalorder %s21, 1
      %p58 = por %p56, %p57
      %p60 = scmp.ne.s32.totalorder %s43, %s59
      %p61 = scmp.eq.s32.totalorder %s21, 0
      %p62 = por %p60, %p61
      %s64 = sadd.s32 %s63, 1
      %p67 = scmp.eq.s32.totalorder %s15, 1
      %p68 = scmp.ne.s32.totalorder %s63, %s65
      %p69 = scmp.eq.s32.totalorder %s15, 0
      %p70 = por %p68, %p69
      %p71 = scmp.ne.s32.totalorder %s63, %s65
      %p72 = scmp.eq.s32.totalorder %s20, 1
      %p73 = por %p71, %p72
      %p74 = scmp.ne.s32.totalorder %s65, %s66
      %p75 = scmp.eq.s32.totalorder %s20, 0
      %p76 = por %p74, %p75
      %p77 = scmp.ne.s32.totalorder %s65, %s66
      %p78 = scmp.eq.s32.totalorder %s21, 1
      %p79 = por %p77, %p78
      %p81 = scmp.ne.s32.totalorder %s66, %s80
      %p82 = scmp.eq.s32.totalorder %s21, 0
      %p83 = por %p81, %p82
      %s85 = sadd.s32 %s84, 1
      %p88 = scmp.eq.s32.totalorder %s15, 1
      %p89 = scmp.ne.s32.totalorder %s84, %s86
      %p90 = scmp.eq.s32.totalorder %s15, 0
      %p91 = por %p89, %p90
      %p92 = scmp.ne.s32.totalorder %s84, %s86
      %p93 = scmp.eq.s32.totalorder %s20, 1
      %p94 = por %p92, %p93
      %p95 = scmp.ne.s32.totalorder %s86, %s87
      %p96 = scmp.eq.s32.totalorder %s20, 0
      %p97 = por %p95, %p96
      %p98 = scmp.ne.s32.totalorder %s86, %s87
      %p99 = scmp.eq.s32.totalorder %s21, 1
      %p100 = por %p98, %p99
      %p102 = scmp.ne.s32.totalorder %s87, %s101
      %p103 = scmp.eq.s32.totalorder %s21, 0
      %p104 = por %p102, %p103
      %s105 = ssub.s32 %s22, %s34
      %s106 = ssub.s32 %s23, %s30
      %s107 = sor.u32 %s105, %s106
      %p108 = scmp.eq.s32.totalorder %s107, 0
      %s110 = sadd.s32 %s109, 1
      %s111 = scalar_select %p108, %s109, %s110
      %p114 = pneg %p108
      %p115 = scmp.eq.s32.totalorder %s15, 1
      %p116 = por %p114, %p115
      %p117 = scmp.ne.s32.totalorder %s109, %s112
      %p118 = scmp.eq.s32.totalorder %s15, 0
      %p119 = por %p117, %p118
      %p120 = scmp.ne.s32.totalorder %s109, %s112
      %p121 = scmp.eq.s32.totalorder %s20, 1
      %p122 = por %p120, %p121
      %p123 = scmp.ne.s32.totalorder %s112, %s113
      %p124 = scmp.eq.s32.totalorder %s20, 0
      %p125 = por %p123, %p124
      %p126 = scmp.ne.s32.totalorder %s112, %s113
      %p127 = scmp.eq.s32.totalorder %s21, 1
      %p128 = por %p126, %p127
      %p130 = scmp.ne.s32.totalorder %s113, %s129
      %p131 = scmp.eq.s32.totalorder %s21, 0
      %p132 = por %p130, %p131
      %p133 = scmp.le.s32.totalorder 1, %s15
      %p134 = scmp.lt.s32.totalorder %s15, 3
      %p135 = pnand %p133, %p134
      %p136 = pneg %p135
      // Predicated region
      $region9: #{tpu_custom_call.1} parent=5 // pred_check
        _
      $region10: #{tpu_custom_call.1} parent=5 // pred_check_branch
        %138 = sbr.rel (%p135) target = $region12
      $region11: #{tpu_custom_call.1} parent=5 // pred_region
        %s139 = ssub.s32 %s15, 1
        // Predicated region
        $region13: #{tpu_custom_call.1} parent=11 // pred_check
          %p140 = pneg %p76
        $region14: #{tpu_custom_call.1} parent=11 // pred_check_branch
          %142 = sbr.rel (%p140) target = $region16
        $region15: #{tpu_custom_call.1} parent=11 // pred_region
          _
        $region16: #{tpu_custom_call.1} parent=11 // pred_fallthru
          _
        // Predicated region
        $region17: #{tpu_custom_call.1} parent=11 // pred_check
          %p143 = pneg %p97
        $region18: #{tpu_custom_call.1} parent=11 // pred_check_branch
          %145 = sbr.rel (%p143) target = $region20
        $region19: #{tpu_custom_call.1} parent=11 // pred_region
          _
        $region20: #{tpu_custom_call.1} parent=11 // pred_fallthru
          _
      $region12: #{tpu_custom_call.1} parent=5 // pred_fallthru
        _
      %p146 = scmp.lt.s32.totalorder %s15, 2
      // Predicated region
      $region21: #{tpu_custom_call.1} parent=5 // pred_check
        %p147 = pneg %p146
      $region22: #{tpu_custom_call.1} parent=5 // pred_check_branch
        %149 = sbr.rel (%p147) target = $region24
      $region23: #{tpu_custom_call.1} parent=5 // pred_region
        // Predicated region
        $region25: #{tpu_custom_call.1} parent=23 // pred_check
          %p150 = pneg %p49
        $region26: #{tpu_custom_call.1} parent=23 // pred_check_branch
          %152 = sbr.rel (%p150) target = $region28
        $region27: #{tpu_custom_call.1} parent=23 // pred_region
          %s153 = sand.u32 %s39, 1
          %s154 = scalar_lea.sflag [#allocation3], %s153
          %s155 = sand.u32 %s39, 1
          %s156 = smul.addr %s155, 8
          %s157 = scalar_lea.vmem [#allocation2], %s156
          %s159 = ssub.s32 128, 128
          %160 = vsyncadd %s154, %s159
          %s161 = sadd.s32 %s23, %s22
          %s162 = smul.addr %s161, 128
          %s163 = scalar_lea.hbm %s0, %s162
          %s165 = sshll.u32 %s157, 4
          %s166 = int_to_ptr.vmem [resolvable:$true] %s165
          %168 = dma.hbm_to_vmem [thread:$0]  %s163, 128, %s166, %s154
        $region28: #{tpu_custom_call.1} parent=23 // pred_fallthru
          _
      $region24: #{tpu_custom_call.1} parent=5 // pred_fallthru
        _
      %p169 = scmp.le.s32.totalorder 1, %s15
      %p170 = scmp.lt.s32.totalorder %s15, 3
      %p171 = pnand %p169, %p170
      %p172 = pneg %p171
      // Predicated region
      $region29: #{tpu_custom_call.1} parent=5 // pred_check
        _
      $region30: #{tpu_custom_call.1} parent=5 // pred_check_branch
        %174 = sbr.rel (%p171) target = $region32
      $region31: #{tpu_custom_call.1} parent=5 // pred_region
        %s175 = ssub.s32 %s15, 1
        %s176 = sand.u32 %s42, 1
        %s177 = scalar_lea.sflag [#allocation3], %s176
        %s178 = sand.u32 %s42, 1
        %s179 = smul.addr %s178, 8
        %s180 = scalar_lea.vmem [#allocation2], %s179
        // Predicated region
        $region33: #{tpu_custom_call.1} parent=31 // pred_check
          %p181 = pneg %p55
        $region34: #{tpu_custom_call.1} parent=31 // pred_check_branch
          %183 = sbr.rel (%p181) target = $region36
        $region35: #{tpu_custom_call.1} parent=31 // pred_region
          %184 = dma.done %s177, 128
        $region36: #{tpu_custom_call.1} parent=31 // pred_fallthru
          _
        %s185 = sand.u32 %s42, 1
        %s186 = scalar_lea.sflag [#allocation3], %s185
        %s187 = sand.u32 %s42, 1
        %s188 = smul.addr %s187, 8
        %s189 = scalar_lea.vmem [#allocation2], %s188
        %p190 = pneg %p55
        %p191 = pneg %p52
        %p192 = pneg %p76
        %p193 = pneg %p73
        %p194 = pneg %p97
        %p195 = pneg %p94
        %p196 = pneg %p125
        %p197 = pneg %p122
        %s198 = sand.u32 %s112, 1
        %s199 = scalar_lea.sflag [#allocation4], %s198
        %s200 = sand.u32 %s112, 1
        %s201 = smul.addr %s200, 4
        %s202 = scalar_lea.vmem [#allocation5], %s201
        %v203 = vld [vmem:[%s1] sm:$0xf]
        %v204 = vld [vmem:[%s180] sm:$0xff]
        %v205 = vld [vmem:[%s2] sm:$0xf]
        %207 = vset.pattern.permute.xlu0 0
        %208 = vperm.xlu0 %207, %v205
        %v209 = vpop.permute.xlu0 %208
        %vm211 = vcmask 64512
        %v213 = vsel %vm211, %v203, 0
        %215 = vmatprep.subr.mxu0 0.0
        %216 = vmatpush1.msra.mxu0 0.0
        %217 = vmatprep.subr.mxu0 0.0
        %218 = vmatpush1.msra.mxu0 0.0
        %219 = vmatprep.subr.mxu0 0.0
        %220 = vmatpush1.msra.mxu0 0.0
        %221 = vmatprep.subr.mxu0 0.0
        %222 = vmatpush1.msra.mxu0 0.0
        %223 = vmatprep.subr.mxu0 0.0
        %224 = vmatpush1.msra.mxu0 0.0
        %225 = vmatprep.subr.mxu0 0.0
        %226 = vmatpush1.msra.mxu0 0.0
        %227 = vmatprep.subr.mxu0 0.0
        %228 = vmatpush1.msra.mxu0 0.0
        %229 = vmatprep.subr.mxu0 0.0
        %230 = vmatpush1.msra.mxu0 0.0
        %231 = vmatprep.subr.mxu0 0.0
        %232 = vmatpush1.msra.mxu0 0.0
        %233 = vmatprep.subr.mxu0 0.0
        %234 = vmatpush1.msra.mxu0 0.0
        %235 = vmatprep.subr.mxu0 0.0
        %236 = vmatpush1.msra.mxu0 0.0
        %237 = vmatprep.subr.mxu0 0.0
        %238 = vmatpush1.msra.mxu0 0.0
        %239 = vmatprep.subr.mxu0 0.0
        %240 = vmatpush1.msra.mxu0 0.0
        %241 = vmatprep.subr.mxu0 0.0
        %242 = vmatpush1.msra.mxu0 0.0
        %243 = vmatprep.subr.mxu0 0.0
        %244 = vmatpush1.msra.mxu0 0.0
        %245 = vmatprep.subr.mxu0 0.0
        %246 = vmatpush1.msra.mxu0 %v204
        %247 = vmatprep.subr.mxu0 0.0
        %248 = vmatpush2.msra.mxu0 0.0
        %249 = vmatprep.subr.mxu0 0.0
        %250 = vmatpush2.msra.mxu0 0.0
        %251 = vmatprep.subr.mxu0 0.0
        %252 = vmatpush2.msra.mxu0 0.0
        %253 = vmatprep.subr.mxu0 0.0
        %254 = vmatpush2.msra.mxu0 0.0
        %255 = vmatprep.subr.mxu0 0.0
        %256 = vmatpush2.msra.mxu0 0.0
        %257 = vmatprep.subr.mxu0 0.0
        %258 = vmatpush2.msra.mxu0 0.0
        %259 = vmatprep.subr.mxu0 0.0
        %260 = vmatpush2.msra.mxu0 0.0
        %261 = vmatprep.subr.mxu0 0.0
        %262 = vmatpush2.msra.mxu0 0.0
        %263 = vmatprep.subr.mxu0 0.0
        %264 = vmatpush2.msra.mxu0 0.0
        %265 = vmatprep.subr.mxu0 0.0
        %266 = vmatpush2.msra.mxu0 0.0
        %267 = vmatprep.subr.mxu0 0.0
        %268 = vmatpush2.msra.mxu0 0.0
        %269 = vmatprep.subr.mxu0 0.0
        %270 = vmatpush2.msra.mxu0 0.0
        %271 = vmatprep.subr.mxu0 0.0
        %272 = vmatpush2.msra.mxu0 0.0
        %273 = vmatprep.subr.mxu0 0.0
        %274 = vmatpush2.msra.mxu0 0.0
        %275 = vmatprep.subr.mxu0 0.0
        %276 = vmatpush2.msra.mxu0 0.0
        %277 = vmatprep.subr.mxu0 0.0
        %278 = vmatpush2.msra.mxu0 0.0
        %279 = vmatprep.mubr.f32.mxu0 0.0
        %280 = vmatmul.mubr.f32.gmra.mxu0 %v213
        %v281 = vpop.f32.mrf.mxu0
        %v282 = vadd.f32 %v209, %v281
        %v283 = vpop.f32.mrf.mxu0
        %284 = vdwg.mxu0
        %vm285 = vcmask 519168
        %286 = vst.msk [vmem:[%s202] sm:$0xf] %vm285, %v282
        %s287 = sand.u32 %s112, 1
        %s288 = scalar_lea.sflag [#allocation4], %s287
        %s289 = sand.u32 %s112, 1
        %s290 = smul.addr %s289, 4
        %s291 = scalar_lea.vmem [#allocation5], %s290
        // Predicated region
        $region37: #{tpu_custom_call.1} parent=31 // pred_check
          %p292 = pneg %p122
        $region38: #{tpu_custom_call.1} parent=31 // pred_check_branch
          %294 = sbr.rel (%p292) target = $region40
        $region39: #{tpu_custom_call.1} parent=31 // pred_region
          %s296 = ssub.s32 64, 64
          %297 = vsyncadd %s288, %s296
          %s298 = sadd.s32 %s25, %s24
          %s299 = smul.addr %s298, 64
          %s300 = scalar_lea.hbm %s3, %s299
          %s302 = sshll.u32 %s291, 4
          %s303 = int_to_ptr.vmem [resolvable:$true] %s302
          %305 = dma.vmem_to_hbm [thread:$0]  %s303, 64, %s300, %s288
        $region40: #{tpu_custom_call.1} parent=31 // pred_fallthru
          _
      $region32: #{tpu_custom_call.1} parent=5 // pred_fallthru
        _
      %p306 = scmp.le.s32.totalorder 2, %s15
      // Predicated region
      $region41: #{tpu_custom_call.1} parent=5 // pred_check
        %p307 = pneg %p306
      $region42: #{tpu_custom_call.1} parent=5 // pred_check_branch
        %309 = sbr.rel (%p307) target = $region44
      $region43: #{tpu_custom_call.1} parent=5 // pred_region
        %s310 = ssub.s32 %s15, 2
        // Predicated region
        $region45: #{tpu_custom_call.1} parent=43 // pred_check
          %p311 = pneg %p128
        $region46: #{tpu_custom_call.1} parent=43 // pred_check_branch
          %313 = sbr.rel (%p311) target = $region48
        $region47: #{tpu_custom_call.1} parent=43 // pred_region
          %s314 = sand.u32 %s113, 1
          %s315 = scalar_lea.sflag [#allocation4], %s314
          %s316 = sand.u32 %s113, 1
          %s317 = smul.addr %s316, 4
          %s318 = scalar_lea.vmem [#allocation5], %s317
          %319 = dma.done %s315, 64
        $region48: #{tpu_custom_call.1} parent=43 // pred_fallthru
          _
      $region44: #{tpu_custom_call.1} parent=5 // pred_fallthru
        _
    $region6: #{tpu_custom_call.1} parent=1 // loop_footer
      %s19 = sadd.s32 1, %s15
    $region7: #{tpu_custom_call.1} parent=1 // loop_footer_branch
      %14 = sbr.rel target = $region3
    $region8: #{tpu_custom_call.1} parent=1 // loop_exit
      _
    %320 = vsyncpa [#allocation3], 1
    %s321 = scalar_lea.sflag [#allocation3], 1
    %322 = vsyncpa %s321, 1
    %323 = vsyncpa [#allocation4], 1
    %s324 = scalar_lea.sflag [#allocation4], 1
    %325 = vsyncpa %s324, 1

// kernel: tpu_custom_call.1
$region0: #{tpu_custom_call.1}
  #allocation0 [shape = 'u32[]', space=smem, size = 0x4, offset = 0x4, fixed_abs, tag = 'smem constant byte address 0x4 - core index']
  #allocation1 [shape = 'u32[144,128]{1,0:T(1,128)}', space=vmem, size = 0x12000, scoped, tag = 'internal scratch']
  %s0 = inlined_call_operand.hbm [shape: f32[2,8,64], index: 0, kind: input, shape index: {}]
  %s1 = inlined_call_operand.vmem [shape: f32[4,8], index: 1, kind: input, shape index: {}]
  %s2 = inlined_call_operand.vmem [shape: f32[4,1], index: 2, kind: input, shape index: {}]
  %s3 = inlined_call_operand.hbm [shape: f32[2,4,64], index: 3, kind: output, shape index: {}]
  %s4 = sld [smem:[#allocation0]]
  $region49: #{tpu_custom_call.1} parent=0
    _
  %s6 = ssub.s32 1, %s4
  %s7 = scalar_select 0, %s6, %s4
  $region1: #{tpu_custom_call.1} parent=0
    #allocation2 [shape = 'u8[8192]{0}', space=vmem, size = 0x2000, scoped, tag = 'input window, operand 0']
    #allocation3 [shape = 's32[2]{0}', space=sflag, size = 0x8, scoped, tag = 'scoped memory for tpu_custom_call.1']
    #allocation4 [shape = 's32[2]{0}', space=sflag, size = 0x8, scoped, tag = 'scoped memory for tpu_custom_call.1']
    #allocation5 [shape = 'u8[4096]{0}', space=vmem, size = 0x1000, scoped, tag = 'output window, operand 0']
    %8 = vsyncpa [#allocation3], 0
    %s9 = scalar_lea.sflag [#allocation3], 1
    %10 = vsyncpa %s9, 0
    %11 = vsyncpa [#allocation4], 0
    %s12 = scalar_lea.sflag [#allocation4], 1
    %13 = vsyncpa %s12, 0
    loop: start=0, step=1, limit=4
    $region2: #{tpu_custom_call.1} parent=1 // loop_pre_header
      _
    $region3: #{tpu_custom_call.1} parent=1 // loop_header
      %s15 = sphi 0, %s19
      %p16 = scmp.ge.s32.totalorder %s15, 4
      %s22 = sphi 0, %s34
      %s23 = sphi 0, %s30
      %s24 = sphi 0, %s22
      %s25 = sphi 0, %s23
      %s26 = sphi 0, %s24
      %s27 = sphi 0, %s25
      %s39 = sphi 0, %s41
      %s42 = sphi 0, %s39
      %s43 = sphi 0, %s42
      %s59 = sphi 0, %s43
      %s63 = sphi 0, %s63
      %s65 = sphi 0, %s63
      %s66 = sphi 0, %s65
      %s80 = sphi 0, %s66
      %s84 = sphi 0, %s84
      %s86 = sphi 0, %s84
      %s87 = sphi 0, %s86
      %s101 = sphi 0, %s87
      %s109 = sphi 0, %s111
      %s112 = sphi 0, %s109
      %s113 = sphi 0, %s112
      %s129 = sphi 0, %s113
    $region4: #{tpu_custom_call.1} parent=1 // loop_header_branch
      %18 = sbr.rel (%p16) target = $region8
    $region5: #{tpu_custom_call.1} parent=1 // loop_body
      %s20 = ssub.s32 %s15, 1
      %s21 = ssub.s32 %s15, 2
      %s28 = sadd.s32 1, %s23
      %p29 = scmp.ge.s32.totalorder %s28, 1
      %s30 = scalar_select %p29, 0, %s28
      %s31 = sadd.s32 1, %s22
      %s32 = scalar_select %p29, %s31, %s22
      %p33 = scmp.ge.s32.totalorder %s32, 2
      %s34 = scalar_select %p33, 0, %s32
      %s35 = ssub.s32 %s22, %s34
      %s36 = ssub.s32 %s23, %s30
      %s37 = sor.u32 %s35, %s36
      %p38 = scmp.eq.s32.totalorder %s37, 0
      %s40 = sadd.s32 %s39, 1
      %s41 = scalar_select %p38, %s39, %s40
      %p44 = pneg %p38
      %p45 = scmp.eq.s32.totalorder %s15, 1
      %p46 = por %p44, %p45
      %p47 = scmp.ne.s32.totalorder %s39, %s42
      %p48 = scmp.eq.s32.totalorder %s15, 0
      %p49 = por %p47, %p48
      %p50 = scmp.ne.s32.totalorder %s39, %s42
      %p51 = scmp.eq.s32.totalorder %s20, 1
      %p52 = por %p50, %p51
      %p53 = scmp.ne.s32.totalorder %s42, %s43
      %p54 = scmp.eq.s32.totalorder %s20, 0
      %p55 = por %p53, %p54
      %p56 = scmp.ne.s32.totalorder %s42, %s43
      %p57 = scmp.eq.s32.totalorder %s21, 1
      %p58 = por %p56, %p57
      %p60 = scmp.ne.s32.totalorder %s43, %s59
      %p61 = scmp.eq.s32.totalorder %s21, 0
      %p62 = por %p60, %p61
      %s64 = sadd.s32 %s63, 1
      %p67 = scmp.eq.s32.totalorder %s15, 1
      %p68 = scmp.ne.s32.totalorder %s63, %s65
      %p69 = scmp.eq.s32.totalorder %s15, 0
      %p70 = por %p68, %p69
      %p71 = scmp.ne.s32.totalorder %s63, %s65
      %p72 = scmp.eq.s32.totalorder %s20, 1
      %p73 = por %p71, %p72
      %p74 = scmp.ne.s32.totalorder %s65, %s66
      %p75 = scmp.eq.s32.totalorder %s20, 0
      %p76 = por %p74, %p75
      %p77 = scmp.ne.s32.totalorder %s65, %s66
      %p78 = scmp.eq.s32.totalorder %s21, 1
      %p79 = por %p77, %p78
      %p81 = scmp.ne.s32.totalorder %s66, %s80
      %p82 = scmp.eq.s32.totalorder %s21, 0
      %p83 = por %p81, %p82
      %s85 = sadd.s32 %s84, 1
      %p88 = scmp.eq.s32.totalorder %s15, 1
      %p89 = scmp.ne.s32.totalorder %s84, %s86
      %p90 = scmp.eq.s32.totalorder %s15, 0
      %p91 = por %p89, %p90
      %p92 = scmp.ne.s32.totalorder %s84, %s86
      %p93 = scmp.eq.s32.totalorder %s20, 1
      %p94 = por %p92, %p93
      %p95 = scmp.ne.s32.totalorder %s86, %s87
      %p96 = scmp.eq.s32.totalorder %s20, 0
      %p97 = por %p95, %p96
      %p98 = scmp.ne.s32.totalorder %s86, %s87
      %p99 = scmp.eq.s32.totalorder %s21, 1
      %p100 = por %p98, %p99
      %p102 = scmp.ne.s32.totalorder %s87, %s101
      %p103 = scmp.eq.s32.totalorder %s21, 0
      %p104 = por %p102, %p103
      %s105 = ssub.s32 %s22, %s34
      %s106 = ssub.s32 %s23, %s30
      %s107 = sor.u32 %s105, %s106
      %p108 = scmp.eq.s32.totalorder %s107, 0
      %s110 = sadd.s32 %s109, 1
      %s111 = scalar_select %p108, %s109, %s110
      %p114 = pneg %p108
      %p115 = scmp.eq.s32.totalorder %s15, 1
      %p116 = por %p114, %p115
      %p117 = scmp.ne.s32.totalorder %s109, %s112
      %p118 = scmp.eq.s32.totalorder %s15, 0
      %p119 = por %p117, %p118
      %p120 = scmp.ne.s32.totalorder %s109, %s112
      %p121 = scmp.eq.s32.totalorder %s20, 1
      %p122 = por %p120, %p121
      %p123 = scmp.ne.s32.totalorder %s112, %s113
      %p124 = scmp.eq.s32.totalorder %s20, 0
      %p125 = por %p123, %p124
      %p126 = scmp.ne.s32.totalorder %s112, %s113
      %p127 = scmp.eq.s32.totalorder %s21, 1
      %p128 = por %p126, %p127
      %p130 = scmp.ne.s32.totalorder %s113, %s129
      %p131 = scmp.eq.s32.totalorder %s21, 0
      %p132 = por %p130, %p131
      %p133 = scmp.le.s32.totalorder 1, %s15
      %p134 = scmp.lt.s32.totalorder %s15, 3
      %p135 = pnand %p133, %p134
      %p136 = pneg %p135
      // Predicated region
      $region9: #{tpu_custom_call.1} parent=5 // pred_check
        _
      $region10: #{tpu_custom_call.1} parent=5 // pred_check_branch
        %138 = sbr.rel (%p135) target = $region12
      $region11: #{tpu_custom_call.1} parent=5 // pred_region
        %s139 = ssub.s32 %s15, 1
        // Predicated region
        $region13: #{tpu_custom_call.1} parent=11 // pred_check
          %p140 = pneg %p76
        $region14: #{tpu_custom_call.1} parent=11 // pred_check_branch
          %142 = sbr.rel (%p140) target = $region16
        $region15: #{tpu_custom_call.1} parent=11 // pred_region
          _
        $region16: #{tpu_custom_call.1} parent=11 // pred_fallthru
          _
        // Predicated region
        $region17: #{tpu_custom_call.1} parent=11 // pred_check
          %p143 = pneg %p97
        $region18: #{tpu_custom_call.1} parent=11 // pred_check_branch
          %145 = sbr.rel (%p143) target = $region20
        $region19: #{tpu_custom_call.1} parent=11 // pred_region
          _
        $region20: #{tpu_custom_call.1} parent=11 // pred_fallthru
          _
      $region12: #{tpu_custom_call.1} parent=5 // pred_fallthru
        _
      %p146 = scmp.lt.s32.totalorder %s15, 2
      // Predicated region
      $region21: #{tpu_custom_call.1} parent=5 // pred_check
        %p147 = pneg %p146
      $region22: #{tpu_custom_call.1} parent=5 // pred_check_branch
        %149 = sbr.rel (%p147) target = $region24
      $region23: #{tpu_custom_call.1} parent=5 // pred_region
        // Predicated region
        $region25: #{tpu_custom_call.1} parent=23 // pred_check
          %p150 = pneg %p49
        $region26: #{tpu_custom_call.1} parent=23 // pred_check_branch
          %152 = sbr.rel (%p150) target = $region28
        $region27: #{tpu_custom_call.1} parent=23 // pred_region
          %s153 = sand.u32 %s39, 1
          %s154 = scalar_lea.sflag [#allocation3], %s153
          %s155 = sand.u32 %s39, 1
          %s156 = smul.addr %s155, 8
          %s157 = scalar_lea.vmem [#allocation2], %s156
          %s159 = ssub.s32 128, 128
          %160 = vsyncadd %s154, %s159
          %s161 = sadd.s32 %s23, %s22
          %s162 = smul.addr %s161, 128
          %s163 = scalar_lea.hbm %s0, %s162
          %s165 = sshll.u32 %s157, 4
          %s166 = int_to_ptr.vmem [resolvable:$true] %s165
          %168 = dma.hbm_to_vmem [thread:$0]  %s163, 128, %s166, %s154
        $region28: #{tpu_custom_call.1} parent=23 // pred_fallthru
          _
      $region24: #{tpu_custom_call.1} parent=5 // pred_fallthru
        _
      %p169 = scmp.le.s32.totalorder 1, %s15
      %p170 = scmp.lt.s32.totalorder %s15, 3
      %p171 = pnand %p169, %p170
      %p172 = pneg %p171
      // Predicated region
      $region29: #{tpu_custom_call.1} parent=5 // pred_check
        _
      $region30: #{tpu_custom_call.1} parent=5 // pred_check_branch
        %174 = sbr.rel (%p171) target = $region32
      $region31: #{tpu_custom_call.1} parent=5 // pred_region
        %s175 = ssub.s32 %s15, 1
        %s176 = sand.u32 %s42, 1
        %s177 = scalar_lea.sflag [#allocation3], %s176
        %s178 = sand.u32 %s42, 1
        %s179 = smul.addr %s178, 8
        %s180 = scalar_lea.vmem [#allocation2], %s179
        // Predicated region
        $region33: #{tpu_custom_call.1} parent=31 // pred_check
          %p181 = pneg %p55
        $region34: #{tpu_custom_call.1} parent=31 // pred_check_branch
          %183 = sbr.rel (%p181) target = $region36
        $region35: #{tpu_custom_call.1} parent=31 // pred_region
          %184 = dma.done %s177, 128
        $region36: #{tpu_custom_call.1} parent=31 // pred_fallthru
          _
        %s185 = sand.u32 %s42, 1
        %s186 = scalar_lea.sflag [#allocation3], %s185
        %s187 = sand.u32 %s42, 1
        %s188 = smul.addr %s187, 8
        %s189 = scalar_lea.vmem [#allocation2], %s188
        %p190 = pneg %p55
        %p191 = pneg %p52
        %p192 = pneg %p76
        %p193 = pneg %p73
        %p194 = pneg %p97
        %p195 = pneg %p94
        %p196 = pneg %p125
        %p197 = pneg %p122
        %s198 = sand.u32 %s112, 1
        %s199 = scalar_lea.sflag [#allocation4], %s198
        %s200 = sand.u32 %s112, 1
        %s201 = smul.addr %s200, 4
        %s202 = scalar_lea.vmem [#allocation5], %s201
        %v203 = vld [vmem:[%s1] sm:$0xf]
        %v204 = vld [vmem:[%s180] sm:$0xff]
        %v205 = vld [vmem:[%s2] sm:$0xf]
        %207 = vset.pattern.permute.xlu0 0
        %208 = vperm.xlu0 %207, %v205
        %v209 = vpop.permute.xlu0 %208
        %vm211 = vcmask 64512
        %v213 = vsel %vm211, %v203, 0
        %215 = vmatprep.subr.mxu0 0.0
        %216 = vmatpush1.msra.mxu0 0.0
        %217 = vmatprep.subr.mxu0 0.0
        %218 = vmatpush1.msra.mxu0 0.0
        %219 = vmatprep.subr.mxu0 0.0
        %220 = vmatpush1.msra.mxu0 0.0
        %221 = vmatprep.subr.mxu0 0.0
        %222 = vmatpush1.msra.mxu0 0.0
        %223 = vmatprep.subr.mxu0 0.0
        %224 = vmatpush1.msra.mxu0 0.0
        %225 = vmatprep.subr.mxu0 0.0
        %226 = vmatpush1.msra.mxu0 0.0
        %227 = vmatprep.subr.mxu0 0.0
        %228 = vmatpush1.msra.mxu0 0.0
        %229 = vmatprep.subr.mxu0 0.0
        %230 = vmatpush1.msra.mxu0 0.0
        %231 = vmatprep.subr.mxu0 0.0
        %232 = vmatpush1.msra.mxu0 0.0
        %233 = vmatprep.subr.mxu0 0.0
        %234 = vmatpush1.msra.mxu0 0.0
        %235 = vmatprep.subr.mxu0 0.0
        %236 = vmatpush1.msra.mxu0 0.0
        %237 = vmatprep.subr.mxu0 0.0
        %238 = vmatpush1.msra.mxu0 0.0
        %239 = vmatprep.subr.mxu0 0.0
        %240 = vmatpush1.msra.mxu0 0.0
        %241 = vmatprep.subr.mxu0 0.0
        %242 = vmatpush1.msra.mxu0 0.0
        %243 = vmatprep.subr.mxu0 0.0
        %244 = vmatpush1.msra.mxu0 0.0
        %245 = vmatprep.subr.mxu0 0.0
        %246 = vmatpush1.msra.mxu0 %v204
        %247 = vmatprep.subr.mxu0 0.0
        %248 = vmatpush2.msra.mxu0 0.0
        %249 = vmatprep.subr.mxu0 0.0
        %250 = vmatpush2.msra.mxu0 0.0
        %251 = vmatprep.subr.mxu0 0.0
        %252 = vmatpush2.msra.mxu0 0.0
        %253 = vmatprep.subr.mxu0 0.0
        %254 = vmatpush2.msra.mxu0 0.0
        %255 = vmatprep.subr.mxu0 0.0
        %256 = vmatpush2.msra.mxu0 0.0
        %257 = vmatprep.subr.mxu0 0.0
        %258 = vmatpush2.msra.mxu0 0.0
        %259 = vmatprep.subr.mxu0 0.0
        %260 = vmatpush2.msra.mxu0 0.0
        %261 = vmatprep.subr.mxu0 0.0
        %262 = vmatpush2.msra.mxu0 0.0
        %263 = vmatprep.subr.mxu0 0.0
        %264 = vmatpush2.msra.mxu0 0.0
        %265 = vmatprep.subr.mxu0 0.0
        %266 = vmatpush2.msra.mxu0 0.0
        %267 = vmatprep.subr.mxu0 0.0
        %268 = vmatpush2.msra.mxu0 0.0
        %269 = vmatprep.subr.mxu0 0.0
        %270 = vmatpush2.msra.mxu0 0.0
        %271 = vmatprep.subr.mxu0 0.0
        %272 = vmatpush2.msra.mxu0 0.0
        %273 = vmatprep.subr.mxu0 0.0
        %274 = vmatpush2.msra.mxu0 0.0
        %275 = vmatprep.subr.mxu0 0.0
        %276 = vmatpush2.msra.mxu0 0.0
        %277 = vmatprep.subr.mxu0 0.0
        %278 = vmatpush2.msra.mxu0 0.0
        %279 = vmatprep.mubr.f32.mxu0 0.0
        %280 = vmatmul.mubr.f32.gmra.mxu0 %v213
        %v281 = vpop.f32.mrf.mxu0
        %v282 = vadd.f32 %v209, %v281
        %v283 = vpop.f32.mrf.mxu0
        %284 = vdwg.mxu0
        %vm285 = vcmask 519168
        %286 = vst.msk [vmem:[%s202] sm:$0xf] %vm285, %v282
        %s287 = sand.u32 %s112, 1
        %s288 = scalar_lea.sflag [#allocation4], %s287
        %s289 = sand.u32 %s112, 1
        %s290 = smul.addr %s289, 4
        %s291 = scalar_lea.vmem [#allocation5], %s290
        // Predicated region
        $region37: #{tpu_custom_call.1} parent=31 // pred_check
          %p292 = pneg %p122
        $region38: #{tpu_custom_call.1} parent=31 // pred_check_branch
          %294 = sbr.rel (%p292) target = $region40
        $region39: #{tpu_custom_call.1} parent=31 // pred_region
          %s296 = ssub.s32 64, 64
          %297 = vsyncadd %s288, %s296
          %s298 = sadd.s32 %s25, %s24
          %s299 = smul.addr %s298, 64
          %s300 = scalar_lea.hbm %s3, %s299
          %s302 = sshll.u32 %s291, 4
          %s303 = int_to_ptr.vmem [resolvable:$true] %s302
          %305 = dma.vmem_to_hbm [thread:$0]  %s303, 64, %s300, %s288
        $region40: #{tpu_custom_call.1} parent=31 // pred_fallthru
          _
      $region32: #{tpu_custom_call.1} parent=5 // pred_fallthru
        _
      %p306 = scmp.le.s32.totalorder 2, %s15
      // Predicated region
      $region41: #{tpu_custom_call.1} parent=5 // pred_check
        %p307 = pneg %p306
      $region42: #{tpu_custom_call.1} parent=5 // pred_check_branch
        %309 = sbr.rel (%p307) target = $region44
      $region43: #{tpu_custom_call.1} parent=5 // pred_region
        %s310 = ssub.s32 %s15, 2
        // Predicated region
        $region45: #{tpu_custom_call.1} parent=43 // pred_check
          %p311 = pneg %p128
        $region46: #{tpu_custom_call.1} parent=43 // pred_check_branch
          %313 = sbr.rel (%p311) target = $region48
        $region47: #{tpu_custom_call.1} parent=43 // pred_region
          %s314 = sand.u32 %s113, 1
          %s315 = scalar_lea.sflag [#allocation4], %s314
          %s316 = sand.u32 %s113, 1
          %s317 = smul.addr %s316, 4
          %s318 = scalar_lea.vmem [#allocation5], %s317
          %319 = dma.done %s315, 64
        $region48: #{tpu_custom_call.1} parent=43 // pred_fallthru
          _
      $region44: #{tpu_custom_call.1} parent=5 // pred_fallthru
        _
    $region6: #{tpu_custom_call.1} parent=1 // loop_footer
      %s19 = sadd.s32 1, %s15
    $region7: #{tpu_custom_call.1} parent=1 // loop_footer_branch
      %14 = sbr.rel target = $region3
    $region8: #{tpu_custom_call.1} parent=1 // loop_exit
      _
    %320 = vsyncpa [#allocation3], 1
    %s321 = scalar_lea.sflag [#allocation3], 1
    %322 = vsyncpa %s321, 1
    %323 = vsyncpa [#allocation4], 1
    %s324 = scalar_lea.sflag [#allocation4], 1
    %325 = vsyncpa %s324, 1

</llo_original>
